<compile_context>
chip_gen: v5e
topology: v5e:2x2
jax: 0.10.0
libtpu: 0.0.40
codegen_flags: <defaults>
</compile_context>

<pallas_src>
import jax
import jax.numpy as jnp
from jax import lax
from jax.experimental import pallas as pl
from jax.experimental.pallas import tpu as pltpu

EPS = 1e-5
NEG_SLOPE = 0.01        # PyTorch nn.LeakyReLU default
IN_F = 256
H1_F = 128
H2_F = 64               # logical width of layer 2 (padded to 128 lanes in-kernel)
OUT_F = 10              # logical output width
OUT_PAD = 16            # stored output lanes (f32); wrapper slices [:, :10]
W_ROWS = IN_F + H1_F + H1_F   # 512 rows in the packed bf16 weight slab


def _round_up(n, m):
    return ((n + m - 1) // m) * m


def _make_kernel(tile_b, b_pad, b_true):
    inv_b = 1.0 / float(b_true)

    def kernel(x_ref, wbuf_ref, vec_ref, o_ref, h1_ref):
        step = pl.program_id(0)
        last = pl.num_programs(0) - 1

        # ---- Phase A (every grid step): layer-1 matmul for this batch tile ----
        x = x_ref[...].astype(jnp.bfloat16)          # no-op if x is already bf16
        w1 = wbuf_ref[0:IN_F, :]                     # (256, 128) bf16
        row0 = pl.multiple_of(step * tile_b, tile_b)
        h1_ref[pl.ds(row0, tile_b), :] = jnp.dot(
            x, w1, preferred_element_type=jnp.float32)

        # ---- Phase B (last step): BN1/LReLU + layers 2,3 on resident h1 ----
        @pl.when(step == last)
        def _():
            vecs = vec_ref[...]                      # one (8,128) f32 tile
            g1, be1 = vecs[0:1, :], vecs[1:2, :]
            g2, be2 = vecs[2:3, :], vecs[3:4, :]     # 128-wide; pad lanes are 0
            b3 = vecs[4:5, :]

            # Valid-row mask: batch-padding rows are excluded from BN statistics.
            rows = lax.broadcasted_iota(jnp.int32, (b_pad, 1), 0)
            validf = (rows < b_true).astype(jnp.float32)

            def bn_lrelu(h, gamma, beta):
                # Training-mode BatchNorm1d over the valid batch rows (biased
                # variance, two-pass form), then LeakyReLU(0.01).
                mean = jnp.sum(h * validf, axis=0, keepdims=True) * inv_b
                c = h - mean
                cm = c * validf
                var = jnp.sum(cm * cm, axis=0, keepdims=True) * inv_b
                h = c * lax.rsqrt(var + EPS) * gamma + beta
                return jnp.where(h > 0, h, NEG_SLOPE * h)

            h = bn_lrelu(h1_ref[...], g1, be1)                     # (B_pad, 128)

            w2 = wbuf_ref[IN_F:IN_F + H1_F, :]                     # (128,128), cols 64+ zero
            h = jnp.dot(h.astype(jnp.bfloat16), w2,
                        preferred_element_type=jnp.float32)
            h = bn_lrelu(h, g2, be2)                               # pad lanes stay exactly 0

            w3 = wbuf_ref[IN_F + H1_F:W_ROWS, :]                   # (128,128), rows 64+ / cols 10+ zero
            out = jnp.dot(h.astype(jnp.bfloat16), w3,
                          preferred_element_type=jnp.float32) + b3
            # Shrunk writeback: only 16 f32 lanes go back to HBM.
            o_ref[...] = out[:, :OUT_PAD].astype(o_ref.dtype)

    return kernel


def label_predictor(x, packed, tile_b=512):
    """Forward pass. x: [B, 256] (f32 or bf16). Returns [B, 10] f32.

    x.view(B, -1) in the PyTorch forward is a no-op on a [B, 10] tensor, and
    self.featuremap is simply the returned tensor.
    """
    B = x.shape[0]
    tile_b = max(8, (min(tile_b, _round_up(B, 8)) // 8) * 8)
    b_pad = _round_up(B, tile_b)
    if b_pad != B:
        x = jnp.concatenate([x, jnp.zeros((b_pad - B, IN_F), x.dtype)], axis=0)
    n_tiles = b_pad // tile_b

    grid_spec = pltpu.PrefetchScalarGridSpec(
        num_scalar_prefetch=0,
        grid=(n_tiles,),
        in_specs=[
            pl.BlockSpec((tile_b, IN_F), lambda i: (i, 0)),    # x: pipelined batch tiles
            pl.BlockSpec((W_ROWS, H1_F), lambda i: (0, 0)),    # weight slab: resident
            pl.BlockSpec((8, H1_F), lambda i: (0, 0)),         # packed vectors: resident
        ],
        # Output resident across the (arbitrary) batch axis; written once at the end.
        out_specs=pl.BlockSpec((b_pad, OUT_PAD), lambda i: (0, 0)),
        # Persistent h1 scratch (512 B/row f32) spanning the whole padded batch.
        scratch_shapes=[pltpu.VMEM((b_pad, H1_F), jnp.float32)],
    )

    out = pl.pallas_call(
        _make_kernel(tile_b, b_pad, B),
        out_shape=jax.ShapeDtypeStruct((b_pad, OUT_PAD), jnp.float32),
        grid_spec=grid_spec,
        compiler_params=pltpu.CompilerParams(
            dimension_semantics=("arbitrary",)),
    )(x, packed["wbuf"], packed["vecs"])
    return out[:B, :OUT_F]


def init_params(key):
    """Logical (PyTorch-mirroring) parameters, f32.

    Linear weights stored transposed ([in, out]) so the forward does x @ W.
    Layer-1/2 biases are omitted: they cancel exactly in training-mode BN.
    BN gamma=1, beta=0 (PyTorch defaults).
    """
    k1, k2, k3 = jax.random.split(key, 3)

    def lin(k, fan_in, fan_out, with_bias):
        kw, kb = jax.random.split(k)
        bound = 1.0 / jnp.sqrt(fan_in)
        w = jax.random.uniform(kw, (fan_in, fan_out), jnp.float32, -bound, bound)
        b = (jax.random.uniform(kb, (fan_out,), jnp.float32, -bound, bound)
             if with_bias else None)
        return w, b

    w1, _ = lin(k1, IN_F, H1_F, False)
    w2, _ = lin(k2, H1_F, H2_F, False)
    w3, b3 = lin(k3, H2_F, OUT_F, True)
    return {
        "w1": w1, "g1": jnp.ones((H1_F,), jnp.float32), "be1": jnp.zeros((H1_F,), jnp.float32),
        "w2": w2, "g2": jnp.ones((H2_F,), jnp.float32), "be2": jnp.zeros((H2_F,), jnp.float32),
        "w3": w3, "b3": b3,
    }


def pack_params(p):
    """Kernel-ready params: one bf16 weight slab + one f32 per-feature vector tile."""
    w2p = jnp.zeros((H1_F, H1_F), jnp.float32).at[:, :H2_F].set(p["w2"])
    w3p = jnp.zeros((H1_F, H1_F), jnp.float32).at[:H2_F, :OUT_F].set(p["w3"])
    wbuf = jnp.concatenate([p["w1"], w2p, w3p], axis=0).astype(jnp.bfloat16)  # (512,128)

    vecs = jnp.zeros((8, H1_F), jnp.float32)
    vecs = vecs.at[0, :].set(p["g1"])
    vecs = vecs.at[1, :].set(p["be1"])
    vecs = vecs.at[2, :H2_F].set(p["g2"])
    vecs = vecs.at[3, :H2_F].set(p["be2"])
    vecs = vecs.at[4, :OUT_F].set(p["b3"])
    return {"wbuf": wbuf, "vecs": vecs}


def _reference(x, p):
    # Pure-JAX reference with identical numerics (bf16 matmul inputs, f32 accum).
    def mm(a, w):
        return jnp.dot(a.astype(jnp.bfloat16), w.astype(jnp.bfloat16),
                       preferred_element_type=jnp.float32)

    h = mm(x, p["w1"])
    m = h.mean(0, keepdims=True); c = h - m; v = (c * c).mean(0, keepdims=True)
    h = c * lax.rsqrt(v + EPS) * p["g1"] + p["be1"]
    h = jnp.where(h > 0, h, NEG_SLOPE * h)

    h = mm(h, p["w2"])
    m = h.mean(0, keepdims=True); c = h - m; v = (c * c).mean(0, keepdims=True)
    h = c * lax.rsqrt(v + EPS) * p["g2"] + p["be2"]
    h = jnp.where(h > 0, h, NEG_SLOPE * h)

    return mm(h, p["w3"]) + p["b3"]


if __name__ == "__main__":
    key = jax.random.PRNGKey(0)
    kx, kp = jax.random.split(key)

    # B > 1 required for training-mode BatchNorm; B not a multiple of tile_b
    # exercises the batch-padding / masked-statistics path, and tile_b=8 gives
    # a multi-step grid (5 steps) to exercise the pipelined phase-A loop.
    B = 36
    x = jax.random.normal(kx, (B, IN_F), jnp.float32)
    params = init_params(kp)
    packed = pack_params(params)

    out = label_predictor(x, packed, tile_b=8)
    out = jax.block_until_ready(out)

    ref = _reference(x, params)
    assert out.shape == (B, OUT_F)
    assert jnp.allclose(out, ref, atol=1e-2, rtol=1e-2), "mismatch vs reference"

    # TODO(synk): BatchNorm running_mean/running_var buffers are not updated
    # (forward-only training-mode semantics, matching the module's forward()).
    print("KERNEL_OK")
</pallas_src>

<mosaic_0001>
module attributes {stable_mosaic.version = 11 : i64} {
  func.func @kernel(%arg0: i32, %arg1: memref<8x256xf32, #tpu.memory_space<vmem>>, %arg2: memref<512x128xbf16, #tpu.memory_space<vmem>>, %arg3: memref<8x128xf32, #tpu.memory_space<vmem>>, %arg4: memref<40x16xf32, #tpu.memory_space<vmem>>, %arg5: memref<40x128xf32, #tpu.memory_space<vmem>>) attributes {dimension_semantics = [#tpu.dimension_semantics<arbitrary>], iteration_bounds = array<i64: 5>, scalar_prefetch = 0 : i64, scratch_operands = 1 : i64, tpu.core_type = #tpu.core_type<tc>, window_params = [{transform_indices = @transform_0, window_bounds = array<i64: 8, 256>}, {pipeline_mode = #tpu.pipeline_mode<synchronous>, transform_indices = @transform_1, window_bounds = array<i64: 512, 128>}, {pipeline_mode = #tpu.pipeline_mode<synchronous>, transform_indices = @transform_2, window_bounds = array<i64: 8, 128>}, {pipeline_mode = #tpu.pipeline_mode<synchronous>, transform_indices = @transform_3, window_bounds = array<i64: 40, 16>}]} {
    %c0 = arith.constant 0 : index
    %c0_0 = arith.constant 0 : index
    %0 = vector.load %arg1[%c0, %c0_0] : memref<8x256xf32, #tpu.memory_space<vmem>>, vector<8x256xf32>
    %1 = arith.truncf %0 : vector<8x256xf32> to vector<8x256xbf16>
    %c0_1 = arith.constant 0 : index
    %c0_2 = arith.constant 0 : index
    %2 = vector.load %arg2[%c0_1, %c0_2] : memref<512x128xbf16, #tpu.memory_space<vmem>>, vector<256x128xbf16>
    %c8_i32 = arith.constant 8 : i32
    %3 = arith.muli %arg0, %c8_i32 : i32
    %4 = tpu.assume_multiple %3, 8 : i32
    %cst = arith.constant dense<0.000000e+00> : vector<8x128xf32>
    %5 = tpu.matmul %1, %2, %cst {dimension_numbers = #tpu.dot_dimension_numbers<[1], [0], [0], [1], [0, 0, 1, 1], [], []>} : vector<8x256xbf16>, vector<256x128xbf16>, vector<8x128xf32> -> vector<8x128xf32>
    %6 = arith.index_cast %4 : i32 to index
    %c0_3 = arith.constant 0 : index
    %7 = vector.load %arg5[%6, %c0_3] : memref<40x128xf32, #tpu.memory_space<vmem>>, vector<8x128xf32>
    tpu.vector_store %arg5[%6, %c0_3], %5 {strides = array<i32>} : memref<40x128xf32, #tpu.memory_space<vmem>>, vector<8x128xf32>,
    %c4_i32 = arith.constant 4 : i32
    %8 = arith.cmpi eq, %arg0, %c4_i32 : i32
    %9 = arith.extui %8 : i1 to i32
    %c0_i32 = arith.constant 0 : i32
    %10 = arith.cmpi ne, %9, %c0_i32 : i32
    scf.if %10 {
      %c0_4 = arith.constant 0 : index
      %c0_5 = arith.constant 0 : index
      %11 = vector.load %arg3[%c0_4, %c0_5] : memref<8x128xf32, #tpu.memory_space<vmem>>, vector<8x128xf32>
      %12 = vector.extract_strided_slice %11 {offsets = [0, 0], sizes = [1, 128], strides = [1, 1]} : vector<8x128xf32> to vector<1x128xf32>
      %13 = vector.extract_strided_slice %11 {offsets = [1, 0], sizes = [1, 128], strides = [1, 1]} : vector<8x128xf32> to vector<1x128xf32>
      %14 = vector.extract_strided_slice %11 {offsets = [2, 0], sizes = [1, 128], strides = [1, 1]} : vector<8x128xf32> to vector<1x128xf32>
      %15 = vector.extract_strided_slice %11 {offsets = [3, 0], sizes = [1, 128], strides = [1, 1]} : vector<8x128xf32> to vector<1x128xf32>
      %16 = vector.extract_strided_slice %11 {offsets = [4, 0], sizes = [1, 128], strides = [1, 1]} : vector<8x128xf32> to vector<1x128xf32>
      %17 = tpu.iota {dimensions = array<i32: 0>} : vector<40x1xi32>
      %c36_i32 = arith.constant 36 : i32
      %18 = vector.broadcast %c36_i32 : i32 to vector<40x1xi32>
      %19 = arith.cmpi slt, %17, %18 : vector<40x1xi32>
      %20 = arith.extui %19 : vector<40x1xi1> to vector<40x1xi32>
      %21 = arith.sitofp %20 : vector<40x1xi32> to vector<40x1xf32>
      %c0_6 = arith.constant 0 : index
      %c0_7 = arith.constant 0 : index
      %22 = vector.load %arg5[%c0_6, %c0_7] : memref<40x128xf32, #tpu.memory_space<vmem>>, vector<40x128xf32>
      %23 = vector.broadcast %21 : vector<40x1xf32> to vector<40x128xf32>
      %24 = arith.mulf %22, %23 : vector<40x128xf32>
      %cst_8 = arith.constant dense<0.000000e+00> : vector<128xf32>
      %25 = vector.multi_reduction <add>, %24, %cst_8 [0] : vector<40x128xf32> to vector<128xf32>
      %26 = vector.shape_cast %25 : vector<128xf32> to vector<1x128xf32>
      %cst_9 = arith.constant 0.027777778 : f32
      %27 = vector.broadcast %cst_9 : f32 to vector<1x128xf32>
      %28 = arith.mulf %26, %27 : vector<1x128xf32>
      %29 = vector.broadcast %28 : vector<1x128xf32> to vector<40x128xf32>
      %30 = arith.subf %22, %29 : vector<40x128xf32>
      %31 = vector.broadcast %21 : vector<40x1xf32> to vector<40x128xf32>
      %32 = arith.mulf %30, %31 : vector<40x128xf32>
      %33 = arith.mulf %32, %32 : vector<40x128xf32>
      %cst_10 = arith.constant dense<0.000000e+00> : vector<128xf32>
      %34 = vector.multi_reduction <add>, %33, %cst_10 [0] : vector<40x128xf32> to vector<128xf32>
      %35 = vector.shape_cast %34 : vector<128xf32> to vector<1x128xf32>
      %cst_11 = arith.constant 0.027777778 : f32
      %36 = vector.broadcast %cst_11 : f32 to vector<1x128xf32>
      %37 = arith.mulf %35, %36 : vector<1x128xf32>
      %cst_12 = arith.constant 9.99999974E-6 : f32
      %38 = vector.broadcast %cst_12 : f32 to vector<1x128xf32>
      %39 = arith.addf %37, %38 : vector<1x128xf32>
      %40 = math.rsqrt %39 : vector<1x128xf32>
      %41 = vector.broadcast %40 : vector<1x128xf32> to vector<40x128xf32>
      %42 = arith.mulf %30, %41 : vector<40x128xf32>
      %43 = vector.broadcast %12 : vector<1x128xf32> to vector<40x128xf32>
      %44 = arith.mulf %42, %43 : vector<40x128xf32>
      %45 = vector.broadcast %13 : vector<1x128xf32> to vector<40x128xf32>
      %46 = arith.addf %44, %45 : vector<40x128xf32>
      %cst_13 = arith.constant 0.000000e+00 : f32
      %47 = vector.broadcast %cst_13 : f32 to vector<40x128xf32>
      %48 = arith.cmpf ogt, %46, %47 : vector<40x128xf32>
      %cst_14 = arith.constant 0.00999999977 : f32
      %49 = vector.broadcast %cst_14 : f32 to vector<40x128xf32>
      %50 = arith.mulf %49, %46 : vector<40x128xf32>
      %51 = arith.select %48, %46, %50 : vector<40x128xi1>, vector<40x128xf32>
      %c256 = arith.constant 256 : index
      %c0_15 = arith.constant 0 : index
      %52 = vector.load %arg2[%c256, %c0_15] : memref<512x128xbf16, #tpu.memory_space<vmem>>, vector<128x128xbf16>
      %53 = arith.truncf %51 : vector<40x128xf32> to vector<40x128xbf16>
      %cst_16 = arith.constant dense<0.000000e+00> : vector<40x128xf32>
      %54 = tpu.matmul %53, %52, %cst_16 {dimension_numbers = #tpu.dot_dimension_numbers<[1], [0], [0], [1], [0, 0, 1, 1], [], []>} : vector<40x128xbf16>, vector<128x128xbf16>, vector<40x128xf32> -> vector<40x128xf32>
      %55 = vector.broadcast %21 : vector<40x1xf32> to vector<40x128xf32>
      %56 = arith.mulf %54, %55 : vector<40x128xf32>
      %cst_17 = arith.constant dense<0.000000e+00> : vector<128xf32>
      %57 = vector.multi_reduction <add>, %56, %cst_17 [0] : vector<40x128xf32> to vector<128xf32>
      %58 = vector.shape_cast %57 : vector<128xf32> to vector<1x128xf32>
      %cst_18 = arith.constant 0.027777778 : f32
      %59 = vector.broadcast %cst_18 : f32 to vector<1x128xf32>
      %60 = arith.mulf %58, %59 : vector<1x128xf32>
      %61 = vector.broadcast %60 : vector<1x128xf32> to vector<40x128xf32>
      %62 = arith.subf %54, %61 : vector<40x128xf32>
      %63 = vector.broadcast %21 : vector<40x1xf32> to vector<40x128xf32>
      %64 = arith.mulf %62, %63 : vector<40x128xf32>
      %65 = arith.mulf %64, %64 : vector<40x128xf32>
      %cst_19 = arith.constant dense<0.000000e+00> : vector<128xf32>
      %66 = vector.multi_reduction <add>, %65, %cst_19 [0] : vector<40x128xf32> to vector<128xf32>
      %67 = vector.shape_cast %66 : vector<128xf32> to vector<1x128xf32>
      %cst_20 = arith.constant 0.027777778 : f32
      %68 = vector.broadcast %cst_20 : f32 to vector<1x128xf32>
      %69 = arith.mulf %67, %68 : vector<1x128xf32>
      %cst_21 = arith.constant 9.99999974E-6 : f32
      %70 = vector.broadcast %cst_21 : f32 to vector<1x128xf32>
      %71 = arith.addf %69, %70 : vector<1x128xf32>
      %72 = math.rsqrt %71 : vector<1x128xf32>
      %73 = vector.broadcast %72 : vector<1x128xf32> to vector<40x128xf32>
      %74 = arith.mulf %62, %73 : vector<40x128xf32>
      %75 = vector.broadcast %14 : vector<1x128xf32> to vector<40x128xf32>
      %76 = arith.mulf %74, %75 : vector<40x128xf32>
      %77 = vector.broadcast %15 : vector<1x128xf32> to vector<40x128xf32>
      %78 = arith.addf %76, %77 : vector<40x128xf32>
      %cst_22 = arith.constant 0.000000e+00 : f32
      %79 = vector.broadcast %cst_22 : f32 to vector<40x128xf32>
      %80 = arith.cmpf ogt, %78, %79 : vector<40x128xf32>
      %cst_23 = arith.constant 0.00999999977 : f32
      %81 = vector.broadcast %cst_23 : f32 to vector<40x128xf32>
      %82 = arith.mulf %81, %78 : vector<40x128xf32>
      %83 = arith.select %80, %78, %82 : vector<40x128xi1>, vector<40x128xf32>
      %c384 = arith.constant 384 : index
      %c0_24 = arith.constant 0 : index
      %84 = vector.load %arg2[%c384, %c0_24] : memref<512x128xbf16, #tpu.memory_space<vmem>>, vector<128x128xbf16>
      %85 = arith.truncf %83 : vector<40x128xf32> to vector<40x128xbf16>
      %cst_25 = arith.constant dense<0.000000e+00> : vector<40x128xf32>
      %86 = tpu.matmul %85, %84, %cst_25 {dimension_numbers = #tpu.dot_dimension_numbers<[1], [0], [0], [1], [0, 0, 1, 1], [], []>} : vector<40x128xbf16>, vector<128x128xbf16>, vector<40x128xf32> -> vector<40x128xf32>
      %87 = vector.broadcast %16 : vector<1x128xf32> to vector<40x128xf32>
      %88 = arith.addf %86, %87 : vector<40x128xf32>
      %89 = vector.extract_strided_slice %88 {offsets = [0, 0], sizes = [40, 16], strides = [1, 1]} : vector<40x128xf32> to vector<40x16xf32>
      %c0_26 = arith.constant 0 : index
      %c0_27 = arith.constant 0 : index
      %90 = vector.load %arg4[%c0_26, %c0_27] : memref<40x16xf32, #tpu.memory_space<vmem>>, vector<40x16xf32>
      tpu.vector_store %arg4[%c0_26, %c0_27], %89 {strides = array<i32>} : memref<40x16xf32, #tpu.memory_space<vmem>>, vector<40x16xf32>,
    } else {
    }
    return
  }
  func.func @transform_0(%arg0: i32) -> (i32, i32) {
    %c0_i32 = arith.constant 0 : i32
    %c0_i32_0 = arith.constant 0 : i32
    return %arg0, %c0_i32 : i32, i32
  }
  func.func @transform_1(%arg0: i32) -> (i32, i32) {
    %c0_i32 = arith.constant 0 : i32
    %c0_i32_0 = arith.constant 0 : i32
    %c0_i32_1 = arith.constant 0 : i32
    return %c0_i32, %c0_i32_0 : i32, i32
  }
  func.func @transform_2(%arg0: i32) -> (i32, i32) {
    %c0_i32 = arith.constant 0 : i32
    %c0_i32_0 = arith.constant 0 : i32
    %c0_i32_1 = arith.constant 0 : i32
    return %c0_i32, %c0_i32_0 : i32, i32
  }
  func.func @transform_3(%arg0: i32) -> (i32, i32) {
    %c0_i32 = arith.constant 0 : i32
    %c0_i32_0 = arith.constant 0 : i32
    %c0_i32_1 = arith.constant 0 : i32
    return %c0_i32, %c0_i32_0 : i32, i32
  }
}

</mosaic_0001>

<llo_original>
// kernel: tpu_custom_call.1
$region0: #{tpu_custom_call.1}
  #allocation0 [shape = 'u32[]', space=smem, size = 0x4, offset = 0x4, fixed_abs, tag = 'smem constant byte address 0x4 - core index']
  #allocation1 [shape = 'u32[72,128]{1,0:T(1,128)}', space=vmem, size = 0x9000, scoped, tag = 'internal scratch']
  #allocation2 [shape = 'f32[40,128]{1,0:T(8,128)}', space=vmem, size = 0x5000, scoped, tag = 'scratch operand']
  %s0 = inlined_call_operand.hbm [shape: f32[40,256], index: 0, kind: input, shape index: {}]
  %s1 = inlined_call_operand.hbm [shape: bf16[512,128], index: 1, kind: input, shape index: {}]
  %s2 = inlined_call_operand.hbm [shape: f32[8,128], index: 2, kind: input, shape index: {}]
  %s3 = inlined_call_operand.vmem [shape: f32[40,16], index: 3, kind: output, shape index: {}]
  %s4 = sld [smem:[#allocation0]]
  $region61: #{tpu_custom_call.1} parent=0
    _
  %s6 = ssub.s32 1, %s4
  %s7 = scalar_select 0, %s6, %s4
  $region1: #{tpu_custom_call.1} parent=0
    #allocation3 [shape = 'u8[16384]{0}', space=vmem, size = 0x4000, scoped, tag = 'input window, operand 0']
    #allocation4 [shape = 's32[2]{0}', space=sflag, size = 0x8, scoped, tag = 'scoped memory for tpu_custom_call.1']
    #allocation5 [shape = 'u8[131072]{0}', space=vmem, size = 0x20000, scoped, tag = 'input window, operand 1, single buffered']
    #allocation6 [shape = 's32[1]{0}', space=sflag, size = 0x4, scoped, tag = 'scoped memory for tpu_custom_call.1']
    #allocation7 [shape = 'u8[4096]{0}', space=vmem, size = 0x1000, scoped, tag = 'input window, operand 2, single buffered']
    %8 = vsyncpa [#allocation4], 0
    %s9 = scalar_lea.sflag [#allocation4], 1
    %10 = vsyncpa %s9, 0
    %11 = vsyncpa [#allocation6], 0
    loop: start=0, step=1, limit=7
    $region2: #{tpu_custom_call.1} parent=1 // loop_pre_header
      _
    $region3: #{tpu_custom_call.1} parent=1 // loop_header
      %s13 = sphi 0, %s17
      %p14 = scmp.ge.s32.totalorder %s13, 7
      %s23 = sphi 0, %s25
      %s26 = sphi 0, %s23
      %s27 = sphi 0, %s26
      %s43 = sphi 0, %s27
      %s47 = sphi 0, %s47
      %s49 = sphi 0, %s47
      %s50 = sphi 0, %s49
      %s64 = sphi 0, %s50
      %s68 = sphi 0, %s68
      %s70 = sphi 0, %s68
      %s71 = sphi 0, %s70
      %s85 = sphi 0, %s71
      %s89 = sphi 0, %s89
      %s91 = sphi 0, %s89
      %s92 = sphi 0, %s91
      %s106 = sphi 0, %s92
    $region4: #{tpu_custom_call.1} parent=1 // loop_header_branch
      %16 = sbr.rel (%p14) target = $region8
    $region5: #{tpu_custom_call.1} parent=1 // loop_body
      %s18 = ssub.s32 %s13, 1
      %s19 = ssub.s32 %s13, 2
      %s20 = sadd.s32 %s13, 1
      %s21 = ssub.s32 %s13, %s20
      %p22 = scmp.eq.s32.totalorder %s21, 0
      %s24 = sadd.s32 %s23, 1
      %s25 = scalar_select %p22, %s23, %s24
      %p28 = pneg %p22
      %p29 = scmp.eq.s32.totalorder %s13, 4
      %p30 = por %p28, %p29
      %p31 = scmp.ne.s32.totalorder %s23, %s26
      %p32 = scmp.eq.s32.totalorder %s13, 0
      %p33 = por %p31, %p32
      %p34 = scmp.ne.s32.totalorder %s23, %s26
      %p35 = scmp.eq.s32.totalorder %s18, 4
      %p36 = por %p34, %p35
      %p37 = scmp.ne.s32.totalorder %s26, %s27
      %p38 = scmp.eq.s32.totalorder %s18, 0
      %p39 = por %p37, %p38
      %p40 = scmp.ne.s32.totalorder %s26, %s27
      %p41 = scmp.eq.s32.totalorder %s19, 4
      %p42 = por %p40, %p41
      %p44 = scmp.ne.s32.totalorder %s27, %s43
      %p45 = scmp.eq.s32.totalorder %s19, 0
      %p46 = por %p44, %p45
      %s48 = sadd.s32 %s47, 1
      %p51 = scmp.eq.s32.totalorder %s13, 4
      %p52 = scmp.ne.s32.totalorder %s47, %s49
      %p53 = scmp.eq.s32.totalorder %s13, 0
      %p54 = por %p52, %p53
      %p55 = scmp.ne.s32.totalorder %s47, %s49
      %p56 = scmp.eq.s32.totalorder %s18, 4
      %p57 = por %p55, %p56
      %p58 = scmp.ne.s32.totalorder %s49, %s50
      %p59 = scmp.eq.s32.totalorder %s18, 0
      %p60 = por %p58, %p59
      %p61 = scmp.ne.s32.totalorder %s49, %s50
      %p62 = scmp.eq.s32.totalorder %s19, 4
      %p63 = por %p61, %p62
      %p65 = scmp.ne.s32.totalorder %s50, %s64
      %p66 = scmp.eq.s32.totalorder %s19, 0
      %p67 = por %p65, %p66
      %s69 = sadd.s32 %s68, 1
      %p72 = scmp.eq.s32.totalorder %s13, 4
      %p73 = scmp.ne.s32.totalorder %s68, %s70
      %p74 = scmp.eq.s32.totalorder %s13, 0
      %p75 = por %p73, %p74
      %p76 = scmp.ne.s32.totalorder %s68, %s70
      %p77 = scmp.eq.s32.totalorder %s18, 4
      %p78 = por %p76, %p77
      %p79 = scmp.ne.s32.totalorder %s70, %s71
      %p80 = scmp.eq.s32.totalorder %s18, 0
      %p81 = por %p79, %p80
      %p82 = scmp.ne.s32.totalorder %s70, %s71
      %p83 = scmp.eq.s32.totalorder %s19, 4
      %p84 = por %p82, %p83
      %p86 = scmp.ne.s32.totalorder %s71, %s85
      %p87 = scmp.eq.s32.totalorder %s19, 0
      %p88 = por %p86, %p87
      %s90 = sadd.s32 %s89, 1
      %p93 = scmp.eq.s32.totalorder %s13, 4
      %p94 = scmp.ne.s32.totalorder %s89, %s91
      %p95 = scmp.eq.s32.totalorder %s13, 0
      %p96 = por %p94, %p95
      %p97 = scmp.ne.s32.totalorder %s89, %s91
      %p98 = scmp.eq.s32.totalorder %s18, 4
      %p99 = por %p97, %p98
      %p100 = scmp.ne.s32.totalorder %s91, %s92
      %p101 = scmp.eq.s32.totalorder %s18, 0
      %p102 = por %p100, %p101
      %p103 = scmp.ne.s32.totalorder %s91, %s92
      %p104 = scmp.eq.s32.totalorder %s19, 4
      %p105 = por %p103, %p104
      %p107 = scmp.ne.s32.totalorder %s92, %s106
      %p108 = scmp.eq.s32.totalorder %s19, 0
      %p109 = por %p107, %p108
      %p110 = scmp.le.s32.totalorder 1, %s13
      %p111 = scmp.lt.s32.totalorder %s13, 6
      %p112 = pnand %p110, %p111
      %p113 = pneg %p112
      // Predicated region
      $region9: #{tpu_custom_call.1} parent=5 // pred_check
        _
      $region10: #{tpu_custom_call.1} parent=5 // pred_check_branch
        %115 = sbr.rel (%p112) target = $region12
      $region11: #{tpu_custom_call.1} parent=5 // pred_region
        %s116 = ssub.s32 %s13, 1
        // Predicated region
        $region13: #{tpu_custom_call.1} parent=11 // pred_check
          %p117 = pneg %p60
        $region14: #{tpu_custom_call.1} parent=11 // pred_check_branch
          %119 = sbr.rel (%p117) target = $region16
        $region15: #{tpu_custom_call.1} parent=11 // pred_region
          %121 = vsyncadd [#allocation6], 0
          %s122 = sshll.u32 %s1, 4
          %s123 = int_to_ptr.hbm [resolvable:$true] %s122
          %s124 = sshll.u32 [#allocation5], 4
          %s125 = int_to_ptr.vmem [resolvable:$true] %s124
          %130 = dma.hbm_to_vmem [thread:$0]  %s123, 4096, %s125, [#allocation6], 64, 64, 4
        $region16: #{tpu_custom_call.1} parent=11 // pred_fallthru
          _
        // Predicated region
        $region17: #{tpu_custom_call.1} parent=11 // pred_check
          %p131 = pneg %p81
        $region18: #{tpu_custom_call.1} parent=11 // pred_check_branch
          %133 = sbr.rel (%p131) target = $region20
        $region19: #{tpu_custom_call.1} parent=11 // pred_region
          %135 = vsyncadd [#allocation6], 0
          %s137 = sshll.u32 %s2, 4
          %s138 = int_to_ptr.hbm [resolvable:$true] %s137
          %s139 = sshll.u32 [#allocation7], 4
          %s140 = int_to_ptr.vmem [resolvable:$true] %s139
          %142 = dma.hbm_to_vmem [thread:$0]  %s138, 128, %s140, [#allocation6]
        $region20: #{tpu_custom_call.1} parent=11 // pred_fallthru
          _
      $region12: #{tpu_custom_call.1} parent=5 // pred_fallthru
        _
      %p143 = scmp.lt.s32.totalorder %s13, 5
      // Predicated region
      $region21: #{tpu_custom_call.1} parent=5 // pred_check
        %p144 = pneg %p143
      $region22: #{tpu_custom_call.1} parent=5 // pred_check_branch
        %146 = sbr.rel (%p144) target = $region24
      $region23: #{tpu_custom_call.1} parent=5 // pred_region
        // Predicated region
        $region25: #{tpu_custom_call.1} parent=23 // pred_check
          %p147 = pneg %p33
        $region26: #{tpu_custom_call.1} parent=23 // pred_check_branch
          %149 = sbr.rel (%p147) target = $region28
        $region27: #{tpu_custom_call.1} parent=23 // pred_region
          %s150 = sand.u32 %s23, 1
          %s151 = scalar_lea.sflag [#allocation4], %s150
          %s152 = sand.u32 %s23, 1
          %s153 = smul.addr %s152, 16
          %s154 = scalar_lea.vmem [#allocation3], %s153
          %156 = vsyncadd %s151, 0
          %s157 = smul.addr %s13, 2
          %s158 = smul.addr %s157, 8
          %s159 = scalar_lea.hbm %s0, %s158
          %s161 = sshll.u32 %s159, 4
          %s162 = int_to_ptr.hbm [resolvable:$true] %s161
          %s163 = sshll.u32 %s154, 4
          %s164 = int_to_ptr.vmem [resolvable:$true] %s163
          %166 = dma.hbm_to_vmem [thread:$0]  %s162, 256, %s164, %s151
        $region28: #{tpu_custom_call.1} parent=23 // pred_fallthru
          _
      $region24: #{tpu_custom_call.1} parent=5 // pred_fallthru
        _
      %p167 = scmp.le.s32.totalorder 1, %s13
      %p168 = scmp.lt.s32.totalorder %s13, 6
      %p169 = pnand %p167, %p168
      %p170 = pneg %p169
      // Predicated region
      $region29: #{tpu_custom_call.1} parent=5 // pred_check
        _
      $region30: #{tpu_custom_call.1} parent=5 // pred_check_branch
        %172 = sbr.rel (%p169) target = $region32
      $region31: #{tpu_custom_call.1} parent=5 // pred_region
        %s173 = ssub.s32 %s13, 1
        %s174 = sand.u32 %s26, 1
        %s175 = scalar_lea.sflag [#allocation4], %s174
        %s176 = sand.u32 %s26, 1
        %s177 = smul.addr %s176, 16
        %s178 = scalar_lea.vmem [#allocation3], %s177
        // Predicated region
        $region33: #{tpu_custom_call.1} parent=31 // pred_check
          %p179 = pneg %p39
        $region34: #{tpu_custom_call.1} parent=31 // pred_check_branch
          %181 = sbr.rel (%p179) target = $region36
        $region35: #{tpu_custom_call.1} parent=31 // pred_region
          %183 = dma.done %s175, 256
        $region36: #{tpu_custom_call.1} parent=31 // pred_fallthru
          _
        // Predicated region
        $region37: #{tpu_custom_call.1} parent=31 // pred_check
          %p184 = pneg %p60
        $region38: #{tpu_custom_call.1} parent=31 // pred_check_branch
          %186 = sbr.rel (%p184) target = $region40
        $region39: #{tpu_custom_call.1} parent=31 // pred_region
          %188 = dma.done [#allocation6], 4096
        $region40: #{tpu_custom_call.1} parent=31 // pred_fallthru
          _
        // Predicated region
        $region41: #{tpu_custom_call.1} parent=31 // pred_check
          %p189 = pneg %p81
        $region42: #{tpu_custom_call.1} parent=31 // pred_check_branch
          %191 = sbr.rel (%p189) target = $region44
        $region43: #{tpu_custom_call.1} parent=31 // pred_region
          %193 = dma.done [#allocation6], 128
        $region44: #{tpu_custom_call.1} parent=31 // pred_fallthru
          _
        %s194 = sand.u32 %s26, 1
        %s195 = scalar_lea.sflag [#allocation4], %s194
        %s196 = sand.u32 %s26, 1
        %s197 = smul.addr %s196, 16
        %s198 = scalar_lea.vmem [#allocation3], %s197
        %p199 = pneg %p39
        %p200 = pneg %p36
        %p201 = pneg %p60
        %p202 = pneg %p57
        %p203 = pneg %p81
        %p204 = pneg %p78
        %p205 = pneg %p102
        %p206 = pneg %p99
        %v207 = vld [vmem:[%s178] sm:$0xff]
        %v208 = vld [vmem:[%s178 + $0x8] sm:$0xff]
        %v209 = vpack.c.bf16 %v207, %v207
        %v210 = vpack.c.bf16 %v208, %v208
        %v211 = vld [vmem:[#allocation5] sm:$0xf]
        %v212 = vld [vmem:[#allocation5 + $0x4] sm:$0xf]
        %v213 = vld [vmem:[#allocation5 + $0x8] sm:$0xf]
        %v214 = vld [vmem:[#allocation5 + $0xc] sm:$0xf]
        %v215 = vld [vmem:[#allocation5 + $0x10] sm:$0xf]
        %v216 = vld [vmem:[#allocation5 + $0x14] sm:$0xf]
        %v217 = vld [vmem:[#allocation5 + $0x18] sm:$0xf]
        %v218 = vld [vmem:[#allocation5 + $0x1c] sm:$0xf]
        %v219 = vld [vmem:[#allocation5 + $0x20] sm:$0xf]
        %v220 = vld [vmem:[#allocation5 + $0x24] sm:$0xf]
        %v221 = vld [vmem:[#allocation5 + $0x28] sm:$0xf]
        %v222 = vld [vmem:[#allocation5 + $0x2c] sm:$0xf]
        %v223 = vld [vmem:[#allocation5 + $0x30] sm:$0xf]
        %v224 = vld [vmem:[#allocation5 + $0x34] sm:$0xf]
        %v225 = vld [vmem:[#allocation5 + $0x38] sm:$0xf]
        %v226 = vld [vmem:[#allocation5 + $0x3c] sm:$0xf]
        %v227 = vld [vmem:[#allocation5 + $0x40] sm:$0xf]
        %v228 = vld [vmem:[#allocation5 + $0x44] sm:$0xf]
        %v229 = vld [vmem:[#allocation5 + $0x48] sm:$0xf]
        %v230 = vld [vmem:[#allocation5 + $0x4c] sm:$0xf]
        %v231 = vld [vmem:[#allocation5 + $0x50] sm:$0xf]
        %v232 = vld [vmem:[#allocation5 + $0x54] sm:$0xf]
        %v233 = vld [vmem:[#allocation5 + $0x58] sm:$0xf]
        %v234 = vld [vmem:[#allocation5 + $0x5c] sm:$0xf]
        %v235 = vld [vmem:[#allocation5 + $0x60] sm:$0xf]
        %v236 = vld [vmem:[#allocation5 + $0x64] sm:$0xf]
        %v237 = vld [vmem:[#allocation5 + $0x68] sm:$0xf]
        %v238 = vld [vmem:[#allocation5 + $0x6c] sm:$0xf]
        %v239 = vld [vmem:[#allocation5 + $0x70] sm:$0xf]
        %v240 = vld [vmem:[#allocation5 + $0x74] sm:$0xf]
        %v241 = vld [vmem:[#allocation5 + $0x78] sm:$0xf]
        %v242 = vld [vmem:[#allocation5 + $0x7c] sm:$0xf]
        %s243 = smul.u32 %s18, 8
        %v276 = vunpack.c.l.b16 %v211
        %v277 = vunpack.c.l.b16 %v212
        %v278 = vunpack.c.l.b16 %v213
        %v279 = vunpack.c.l.b16 %v214
        %v280 = vunpack.c.l.b16 %v215
        %v281 = vunpack.c.l.b16 %v216
        %v282 = vunpack.c.l.b16 %v217
        %v283 = vunpack.c.l.b16 %v218
        %v284 = vunpack.c.l.b16 %v219
        %v285 = vunpack.c.l.b16 %v220
        %v286 = vunpack.c.l.b16 %v221
        %v287 = vunpack.c.l.b16 %v222
        %v288 = vunpack.c.l.b16 %v223
        %v289 = vunpack.c.l.b16 %v224
        %v290 = vunpack.c.l.b16 %v225
        %v291 = vunpack.c.l.b16 %v226
        %v292 = vunpack.c.l.b16 %v227
        %v293 = vunpack.c.l.b16 %v228
        %v294 = vunpack.c.l.b16 %v229
        %v295 = vunpack.c.l.b16 %v230
        %v296 = vunpack.c.l.b16 %v231
        %v297 = vunpack.c.l.b16 %v232
        %v298 = vunpack.c.l.b16 %v233
        %v299 = vunpack.c.l.b16 %v234
        %v300 = vunpack.c.l.b16 %v235
        %v301 = vunpack.c.l.b16 %v236
        %v302 = vunpack.c.l.b16 %v237
        %v303 = vunpack.c.l.b16 %v238
        %v304 = vunpack.c.l.b16 %v239
        %v305 = vunpack.c.l.b16 %v240
        %v306 = vunpack.c.l.b16 %v241
        %v307 = vunpack.c.l.b16 %v242
        %v308 = vpack.c.b16 %v277, %v276
        %v309 = vpack.c.b16 %v279, %v278
        %v310 = vpack.c.b16 %v281, %v280
        %v311 = vpack.c.b16 %v283, %v282
        %v312 = vpack.c.b16 %v285, %v284
        %v313 = vpack.c.b16 %v287, %v286
        %v314 = vpack.c.b16 %v289, %v288
        %v315 = vpack.c.b16 %v291, %v290
        %v316 = vpack.c.b16 %v293, %v292
        %v317 = vpack.c.b16 %v295, %v294
        %v318 = vpack.c.b16 %v297, %v296
        %v319 = vpack.c.b16 %v299, %v298
        %v320 = vpack.c.b16 %v301, %v300
        %v321 = vpack.c.b16 %v303, %v302
        %v322 = vpack.c.b16 %v305, %v304
        %v323 = vpack.c.b16 %v307, %v306
        %340 = vmatpush.bf16.msra.mxu0 %v315
        %341 = vmatpush.bf16.msra.mxu0 %v314
        %342 = vmatpush.bf16.msra.mxu0 %v313
        %343 = vmatpush.bf16.msra.mxu0 %v312
        %344 = vmatpush.bf16.msra.mxu0 %v311
        %345 = vmatpush.bf16.msra.mxu0 %v310
        %346 = vmatpush.bf16.msra.mxu0 %v309
        %347 = vmatpush.bf16.msra.mxu0 %v308
        %348 = vmatmul.bf16.gmra.mxu0 %v209
        %v349 = vpop.f32.mrf.mxu0
        %v350 = vadd.f32 0.0, %v349
        %v351 = vpop.f32.mrf.mxu0
        %352 = vdwg.mxu0
        %353 = vmatpush.bf16.msra.mxu0 %v323
        %354 = vmatpush.bf16.msra.mxu0 %v322
        %355 = vmatpush.bf16.msra.mxu0 %v321
        %356 = vmatpush.bf16.msra.mxu0 %v320
        %357 = vmatpush.bf16.msra.mxu0 %v319
        %358 = vmatpush.bf16.msra.mxu0 %v318
        %359 = vmatpush.bf16.msra.mxu0 %v317
        %360 = vmatpush.bf16.msra.mxu0 %v316
        %361 = vmatmul.bf16.gmra.mxu0 %v210
        %v362 = vpop.f32.mrf.mxu0
        %v363 = vadd.f32 %v350, %v362
        %v364 = vpop.f32.mrf.mxu0
        %365 = vdwg.mxu0
        %s366 = scalar_lea.vmem [#allocation2], %s243
        %367 = vst [vmem:[%s366] sm:$0xff] %v363
        %p368 = scmp.eq.s32.totalorder %s18, 4
        // Predicated region
        $region45: #{tpu_custom_call.1} parent=31 // pred_check
          %p369 = pneg %p368
        $region46: #{tpu_custom_call.1} parent=31 // pred_check_branch
          %371 = sbr.rel (%p369) target = $region48
        $region47: #{tpu_custom_call.1} parent=31 // pred_region
          %v372 = vld [vmem:[#allocation7] sm:$0xff]
          %v373 = vlaneseq
          %v374 = vshrl.u32 %v373, 7
          %v375 = vadd.s32 %v374, 8
          %v376 = vadd.s32 %v374, 16
          %v377 = vadd.s32 %v374, 24
          %v378 = vadd.s32 %v374, 32
          %vm379 = vcmp.lt.s32.totalorder %v374, 36
          %vm380 = vcmp.lt.s32.totalorder %v375, 36
          %vm381 = vcmp.lt.s32.totalorder %v376, 36
          %vm382 = vcmp.lt.s32.totalorder %v377, 36
          %vm383 = vcmp.lt.s32.totalorder %v378, 36
          %v384 = vsel %vm379, 1, 0
          %v385 = vsel %vm380, 1, 0
          %v386 = vsel %vm381, 1, 0
          %v387 = vsel %vm382, 1, 0
          %v388 = vsel %vm383, 1, 0
          %v389 = vcvt.s32.f32 %v384
          %v390 = vcvt.s32.f32 %v385
          %v391 = vcvt.s32.f32 %v386
          %v392 = vcvt.s32.f32 %v387
          %v393 = vcvt.s32.f32 %v388
          %v394 = vld [vmem:[#allocation2] sm:$0xff]
          %v395 = vld [vmem:[#allocation2 + $0x8] sm:$0xff]
          %v396 = vld [vmem:[#allocation2 + $0x10] sm:$0xff]
          %v397 = vld [vmem:[#allocation2 + $0x18] sm:$0xff]
          %v398 = vld [vmem:[#allocation2 + $0x20] sm:$0xff]
          %v399 = vmul.f32 %v394, %v389
          %v400 = vmul.f32 %v395, %v390
          %v401 = vmul.f32 %v396, %v391
          %v402 = vmul.f32 %v397, %v392
          %v403 = vmul.f32 %v398, %v393
          %v404 = vadd.f32 %v399, %v400
          %v405 = vadd.f32 %v404, %v401
          %v406 = vadd.f32 %v405, %v402
          %v407 = vadd.f32 %v406, %v403
          %v408 = vrot.slane %v407, 4
          %v409 = vadd.f32 %v407, %v408
          %v410 = vrot.slane %v409, 2
          %v411 = vadd.f32 %v409, %v410
          %v412 = vrot.slane %v411, 1
          %v413 = vadd.f32 %v411, %v412
          %v414 = vmul.f32 %v413, 0.027777778
          %v415 = vsub.f32 %v394, %v414
          %v416 = vsub.f32 %v395, %v414
          %v417 = vsub.f32 %v396, %v414
          %v418 = vsub.f32 %v397, %v414
          %v419 = vsub.f32 %v398, %v414
          %v420 = vmul.f32 %v415, %v389
          %v421 = vmul.f32 %v416, %v390
          %v422 = vmul.f32 %v417, %v391
          %v423 = vmul.f32 %v418, %v392
          %v424 = vmul.f32 %v419, %v393
          %v425 = vmul.f32 %v420, %v420
          %v426 = vmul.f32 %v421, %v421
          %v427 = vmul.f32 %v422, %v422
          %v428 = vmul.f32 %v423, %v423
          %v429 = vmul.f32 %v424, %v424
          %v430 = vadd.f32 %v425, %v426
          %v431 = vadd.f32 %v430, %v427
          %v432 = vadd.f32 %v431, %v428
          %v433 = vadd.f32 %v432, %v429
          %v434 = vrot.slane %v433, 4
          %v435 = vadd.f32 %v433, %v434
          %v436 = vrot.slane %v435, 2
          %v437 = vadd.f32 %v435, %v436
          %v438 = vrot.slane %v437, 1
          %v439 = vadd.f32 %v437, %v438
          %v440 = vmul.f32 %v439, 0.027777778
          %v441 = vadd.f32 %v440, 1e-05
          %v442 = vrsqrt.pop %v441
          %v443 = vmul.f32 %v442, %v441
          %v444 = vmul.f32 %v443, %v442
          %v445 = vmul.f32 0.5, %v444
          %v446 = vsub.f32 1.5, %v445
          %v447 = vmul.f32 %v442, %v446
          %vm448 = vweird.f32 %v441
          %vm449 = vweird.f32 %v442
          %vm450 = vmor %vm448, %vm449
          %v451 = vsel %vm450, %v442, %v447
          %v452 = vmul.f32 %v415, %v451
          %v453 = vmul.f32 %v416, %v451
          %v454 = vmul.f32 %v417, %v451
          %v455 = vmul.f32 %v418, %v451
          %v456 = vmul.f32 %v419, %v451
          %v457 = vperm.slane %v372, 0
          %v458 = vmul.f32 %v452, %v457
          %v459 = vmul.f32 %v453, %v457
          %v460 = vmul.f32 %v454, %v457
          %v461 = vmul.f32 %v455, %v457
          %v462 = vmul.f32 %v456, %v457
          %v463 = vperm.slane %v372, 1
          %v464 = vadd.f32 %v458, %v463
          %v465 = vadd.f32 %v459, %v463
          %v466 = vadd.f32 %v460, %v463
          %v467 = vadd.f32 %v461, %v463
          %v468 = vadd.f32 %v462, %v463
          %vm469 = vcmp.gt.f32.partialorder %v464, 0.0
          %vm470 = vcmp.gt.f32.partialorder %v465, 0.0
          %vm471 = vcmp.gt.f32.partialorder %v466, 0.0
          %vm472 = vcmp.gt.f32.partialorder %v467, 0.0
          %vm473 = vcmp.gt.f32.partialorder %v468, 0.0
          %v474 = vmul.f32 %v464, 0.01
          %v475 = vmul.f32 %v465, 0.01
          %v476 = vmul.f32 %v466, 0.01
          %v477 = vmul.f32 %v467, 0.01
          %v478 = vmul.f32 %v468, 0.01
          %v479 = vsel %vm469, %v464, %v474
          %v480 = vsel %vm470, %v465, %v475
          %v481 = vsel %vm471, %v466, %v476
          %v482 = vsel %vm472, %v467, %v477
          %v483 = vsel %vm473, %v468, %v478
          %v484 = vld [vmem:[#allocation5 + $0x80] sm:$0xf]
          %v485 = vld [vmem:[#allocation5 + $0x84] sm:$0xf]
          %v486 = vld [vmem:[#allocation5 + $0x88] sm:$0xf]
          %v487 = vld [vmem:[#allocation5 + $0x8c] sm:$0xf]
          %v488 = vld [vmem:[#allocation5 + $0x90] sm:$0xf]
          %v489 = vld [vmem:[#allocation5 + $0x94] sm:$0xf]
          %v490 = vld [vmem:[#allocation5 + $0x98] sm:$0xf]
          %v491 = vld [vmem:[#allocation5 + $0x9c] sm:$0xf]
          %v492 = vld [vmem:[#allocation5 + $0xa0] sm:$0xf]
          %v493 = vld [vmem:[#allocation5 + $0xa4] sm:$0xf]
          %v494 = vld [vmem:[#allocation5 + $0xa8] sm:$0xf]
          %v495 = vld [vmem:[#allocation5 + $0xac] sm:$0xf]
          %v496 = vld [vmem:[#allocation5 + $0xb0] sm:$0xf]
          %v497 = vld [vmem:[#allocation5 + $0xb4] sm:$0xf]
          %v498 = vld [vmem:[#allocation5 + $0xb8] sm:$0xf]
          %v499 = vld [vmem:[#allocation5 + $0xbc] sm:$0xf]
          %v500 = vpack.c.bf16 %v480, %v479
          %v501 = vpack.c.bf16 %v482, %v481
          %v502 = vpack.c.bf16 %v483, %v483
          %v519 = vunpack.c.l.b16 %v484
          %v520 = vunpack.c.l.b16 %v485
          %v521 = vunpack.c.l.b16 %v486
          %v522 = vunpack.c.l.b16 %v487
          %v523 = vunpack.c.l.b16 %v488
          %v524 = vunpack.c.l.b16 %v489
          %v525 = vunpack.c.l.b16 %v490
          %v526 = vunpack.c.l.b16 %v491
          %v527 = vunpack.c.l.b16 %v492
          %v528 = vunpack.c.l.b16 %v493
          %v529 = vunpack.c.l.b16 %v494
          %v530 = vunpack.c.l.b16 %v495
          %v531 = vunpack.c.l.b16 %v496
          %v532 = vunpack.c.l.b16 %v497
          %v533 = vunpack.c.l.b16 %v498
          %v534 = vunpack.c.l.b16 %v499
          %v535 = vpack.c.b16 %v520, %v519
          %v536 = vpack.c.b16 %v522, %v521
          %v537 = vpack.c.b16 %v524, %v523
          %v538 = vpack.c.b16 %v526, %v525
          %v539 = vpack.c.b16 %v528, %v527
          %v540 = vpack.c.b16 %v530, %v529
          %v541 = vpack.c.b16 %v532, %v531
          %v542 = vpack.c.b16 %v534, %v533
          %551 = vmatpush.bf16.msra.mxu0 %v542
          %552 = vmatpush.bf16.msra.mxu0 %v541
          %553 = vmatpush.bf16.msra.mxu0 %v540
          %554 = vmatpush.bf16.msra.mxu0 %v539
          %555 = vmatpush.bf16.msra.mxu0 %v538
          %556 = vmatpush.bf16.msra.mxu0 %v537
          %557 = vmatpush.bf16.msra.mxu0 %v536
          %558 = vmatpush.bf16.msra.mxu0 %v535
          %559 = vmatmul.bf16.gmra.mxu0 %v500
          %v560 = vpop.f32.mrf.mxu0
          %v561 = vadd.f32 0.0, %v560
          %v562 = vpop.f32.mrf.mxu0
          %v563 = vadd.f32 0.0, %v562
          %564 = vmatmul.bf16.gmra.mxu0 %v501
          %v565 = vpop.f32.mrf.mxu0
          %v566 = vadd.f32 0.0, %v565
          %v567 = vpop.f32.mrf.mxu0
          %v568 = vadd.f32 0.0, %v567
          %569 = vmatmul.bf16.gmra.mxu0 %v502
          %v570 = vpop.f32.mrf.mxu0
          %v571 = vadd.f32 0.0, %v570
          %v572 = vpop.f32.mrf.mxu0
          %573 = vdwg.mxu0
          %v574 = vmul.f32 %v561, %v389
          %v575 = vmul.f32 %v563, %v390
          %v576 = vmul.f32 %v566, %v391
          %v577 = vmul.f32 %v568, %v392
          %v578 = vmul.f32 %v571, %v393
          %v579 = vadd.f32 %v574, %v575
          %v580 = vadd.f32 %v579, %v576
          %v581 = vadd.f32 %v580, %v577
          %v582 = vadd.f32 %v581, %v578
          %v583 = vrot.slane %v582, 4
          %v584 = vadd.f32 %v582, %v583
          %v585 = vrot.slane %v584, 2
          %v586 = vadd.f32 %v584, %v585
          %v587 = vrot.slane %v586, 1
          %v588 = vadd.f32 %v586, %v587
          %v589 = vmul.f32 %v588, 0.027777778
          %v590 = vsub.f32 %v561, %v589
          %v591 = vsub.f32 %v563, %v589
          %v592 = vsub.f32 %v566, %v589
          %v593 = vsub.f32 %v568, %v589
          %v594 = vsub.f32 %v571, %v589
          %v595 = vmul.f32 %v590, %v389
          %v596 = vmul.f32 %v591, %v390
          %v597 = vmul.f32 %v592, %v391
          %v598 = vmul.f32 %v593, %v392
          %v599 = vmul.f32 %v594, %v393
          %v600 = vmul.f32 %v595, %v595
          %v601 = vmul.f32 %v596, %v596
          %v602 = vmul.f32 %v597, %v597
          %v603 = vmul.f32 %v598, %v598
          %v604 = vmul.f32 %v599, %v599
          %v605 = vadd.f32 %v600, %v601
          %v606 = vadd.f32 %v605, %v602
          %v607 = vadd.f32 %v606, %v603
          %v608 = vadd.f32 %v607, %v604
          %v609 = vrot.slane %v608, 4
          %v610 = vadd.f32 %v608, %v609
          %v611 = vrot.slane %v610, 2
          %v612 = vadd.f32 %v610, %v611
          %v613 = vrot.slane %v612, 1
          %v614 = vadd.f32 %v612, %v613
          %v615 = vmul.f32 %v614, 0.027777778
          %v616 = vadd.f32 %v615, 1e-05
          %v617 = vrsqrt.pop %v616
          %v618 = vmul.f32 %v617, %v616
          %v619 = vmul.f32 %v618, %v617
          %v620 = vmul.f32 0.5, %v619
          %v621 = vsub.f32 1.5, %v620
          %v622 = vmul.f32 %v617, %v621
          %vm623 = vweird.f32 %v616
          %vm624 = vweird.f32 %v617
          %vm625 = vmor %vm623, %vm624
          %v626 = vsel %vm625, %v617, %v622
          %v627 = vmul.f32 %v590, %v626
          %v628 = vmul.f32 %v591, %v626
          %v629 = vmul.f32 %v592, %v626
          %v630 = vmul.f32 %v593, %v626
          %v631 = vmul.f32 %v594, %v626
          %v632 = vperm.slane %v372, 2
          %v633 = vmul.f32 %v627, %v632
          %v634 = vmul.f32 %v628, %v632
          %v635 = vmul.f32 %v629, %v632
          %v636 = vmul.f32 %v630, %v632
          %v637 = vmul.f32 %v631, %v632
          %v638 = vperm.slane %v372, 3
          %v639 = vadd.f32 %v633, %v638
          %v640 = vadd.f32 %v634, %v638
          %v641 = vadd.f32 %v635, %v638
          %v642 = vadd.f32 %v636, %v638
          %v643 = vadd.f32 %v637, %v638
          %vm644 = vcmp.gt.f32.partialorder %v639, 0.0
          %vm645 = vcmp.gt.f32.partialorder %v640, 0.0
          %vm646 = vcmp.gt.f32.partialorder %v641, 0.0
          %vm647 = vcmp.gt.f32.partialorder %v642, 0.0
          %vm648 = vcmp.gt.f32.partialorder %v643, 0.0
          %v649 = vmul.f32 %v639, 0.01
          %v650 = vmul.f32 %v640, 0.01
          %v651 = vmul.f32 %v641, 0.01
          %v652 = vmul.f32 %v642, 0.01
          %v653 = vmul.f32 %v643, 0.01
          %v654 = vsel %vm644, %v639, %v649
          %v655 = vsel %vm645, %v640, %v650
          %v656 = vsel %vm646, %v641, %v651
          %v657 = vsel %vm647, %v642, %v652
          %v658 = vsel %vm648, %v643, %v653
          %v659 = vld [vmem:[#allocation5 + $0xc0] sm:$0xf]
          %v660 = vld [vmem:[#allocation5 + $0xc4] sm:$0xf]
          %v661 = vld [vmem:[#allocation5 + $0xc8] sm:$0xf]
          %v662 = vld [vmem:[#allocation5 + $0xcc] sm:$0xf]
          %v663 = vld [vmem:[#allocation5 + $0xd0] sm:$0xf]
          %v664 = vld [vmem:[#allocation5 + $0xd4] sm:$0xf]
          %v665 = vld [vmem:[#allocation5 + $0xd8] sm:$0xf]
          %v666 = vld [vmem:[#allocation5 + $0xdc] sm:$0xf]
          %v667 = vld [vmem:[#allocation5 + $0xe0] sm:$0xf]
          %v668 = vld [vmem:[#allocation5 + $0xe4] sm:$0xf]
          %v669 = vld [vmem:[#allocation5 + $0xe8] sm:$0xf]
          %v670 = vld [vmem:[#allocation5 + $0xec] sm:$0xf]
          %v671 = vld [vmem:[#allocation5 + $0xf0] sm:$0xf]
          %v672 = vld [vmem:[#allocation5 + $0xf4] sm:$0xf]
          %v673 = vld [vmem:[#allocation5 + $0xf8] sm:$0xf]
          %v674 = vld [vmem:[#allocation5 + $0xfc] sm:$0xf]
          %v675 = vpack.c.bf16 %v655, %v654
          %v676 = vpack.c.bf16 %v657, %v656
          %v677 = vpack.c.bf16 %v658, %v658
          %v678 = vperm.slane %v372, 4
          %v695 = vunpack.c.l.b16 %v659
          %v696 = vunpack.c.l.b16 %v660
          %v697 = vunpack.c.l.b16 %v661
          %v698 = vunpack.c.l.b16 %v662
          %v699 = vunpack.c.l.b16 %v663
          %v700 = vunpack.c.l.b16 %v664
          %v701 = vunpack.c.l.b16 %v665
          %v702 = vunpack.c.l.b16 %v666
          %v703 = vunpack.c.l.b16 %v667
          %v704 = vunpack.c.l.b16 %v668
          %v705 = vunpack.c.l.b16 %v669
          %v706 = vunpack.c.l.b16 %v670
          %v707 = vunpack.c.l.b16 %v671
          %v708 = vunpack.c.l.b16 %v672
          %v709 = vunpack.c.l.b16 %v673
          %v710 = vunpack.c.l.b16 %v674
          %v711 = vpack.c.b16 %v696, %v695
          %v712 = vpack.c.b16 %v698, %v697
          %v713 = vpack.c.b16 %v700, %v699
          %v714 = vpack.c.b16 %v702, %v701
          %v715 = vpack.c.b16 %v704, %v703
          %v716 = vpack.c.b16 %v706, %v705
          %v717 = vpack.c.b16 %v708, %v707
          %v718 = vpack.c.b16 %v710, %v709
          %727 = vmatpush.bf16.msra.mxu0 %v718
          %728 = vmatpush.bf16.msra.mxu0 %v717
          %729 = vmatpush.bf16.msra.mxu0 %v716
          %730 = vmatpush.bf16.msra.mxu0 %v715
          %731 = vmatpush.bf16.msra.mxu0 %v714
          %732 = vmatpush.bf16.msra.mxu0 %v713
          %733 = vmatpush.bf16.msra.mxu0 %v712
          %734 = vmatpush.bf16.msra.mxu0 %v711
          %735 = vmatmul.bf16.gmra.mxu0 %v675
          %v736 = vpop.f32.mrf.mxu0
          %v737 = vadd.f32 %v678, %v736
          %v738 = vpop.f32.mrf.mxu0
          %v739 = vadd.f32 %v678, %v738
          %740 = vmatmul.bf16.gmra.mxu0 %v676
          %v741 = vpop.f32.mrf.mxu0
          %v742 = vadd.f32 %v678, %v741
          %v743 = vpop.f32.mrf.mxu0
          %v744 = vadd.f32 %v678, %v743
          %745 = vmatmul.bf16.gmra.mxu0 %v677
          %v746 = vpop.f32.mrf.mxu0
          %v747 = vadd.f32 %v678, %v746
          %v748 = vpop.f32.mrf.mxu0
          %749 = vdwg.mxu0
          %vm750 = vcmask 130048
          %751 = vst.msk [vmem:[%s3] sm:$0xff] %vm750, %v737
          %752 = vst.msk [vmem:[%s3 + $0x8] sm:$0xff] %vm750, %v739
          %753 = vst.msk [vmem:[%s3 + $0x10] sm:$0xff] %vm750, %v742
          %754 = vst.msk [vmem:[%s3 + $0x18] sm:$0xff] %vm750, %v744
          %755 = vst.msk [vmem:[%s3 + $0x20] sm:$0xff] %vm750, %v747
        $region48: #{tpu_custom_call.1} parent=31 // pred_fallthru
          _
        // Predicated region
        $region49: #{tpu_custom_call.1} parent=31 // pred_check
          %p756 = pneg %p99
        $region50: #{tpu_custom_call.1} parent=31 // pred_check_branch
          %758 = sbr.rel (%p756) target = $region52
        $region51: #{tpu_custom_call.1} parent=31 // pred_region
          _
        $region52: #{tpu_custom_call.1} parent=31 // pred_fallthru
          _
        // Predicated region
        $region53: #{tpu_custom_call.1} parent=31 // pred_check
          %p759 = pneg %p99
        $region54: #{tpu_custom_call.1} parent=31 // pred_check_branch
          %761 = sbr.rel (%p759) target = $region56
        $region55: #{tpu_custom_call.1} parent=31 // pred_region
          _
        $region56: #{tpu_custom_call.1} parent=31 // pred_fallthru
          _
      $region32: #{tpu_custom_call.1} parent=5 // pred_fallthru
        _
      %p762 = scmp.le.s32.totalorder 2, %s13
      // Predicated region
      $region57: #{tpu_custom_call.1} parent=5 // pred_check
        %p763 = pneg %p762
      $region58: #{tpu_custom_call.1} parent=5 // pred_check_branch
        %765 = sbr.rel (%p763) target = $region60
      $region59: #{tpu_custom_call.1} parent=5 // pred_region
        %s766 = ssub.s32 %s13, 2
      $region60: #{tpu_custom_call.1} parent=5 // pred_fallthru
        _
    $region6: #{tpu_custom_call.1} parent=1 // loop_footer
      %s17 = sadd.s32 1, %s13
    $region7: #{tpu_custom_call.1} parent=1 // loop_footer_branch
      %12 = sbr.rel target = $region3
    $region8: #{tpu_custom_call.1} parent=1 // loop_exit
      _
    %767 = vsyncpa [#allocation4], 1
    %s768 = scalar_lea.sflag [#allocation4], 1
    %769 = vsyncpa %s768, 1
    %770 = vsyncpa [#allocation6], 1

</llo_original>
